<compile_context>
chip_gen: v7x
topology: tpu7x:2x2x1
jax: 0.10.0
libtpu: 0.0.40
codegen_flags: <defaults>
</compile_context>

<pallas_src>
import jax
import jax.numpy as jnp
from jax.experimental import pallas as pl
from jax.experimental.pallas import tpu as pltpu

NEGATIVE_SLOPE = 0.01
LANE = 128  # TPU lane width; pad OUT up to this for dense stores.


def linear_leakyrelu_kernel(x_ref, w_ref, b_ref, o_ref):
    # x_ref: (B, IN), w_ref: (IN, OUT_PAD), b_ref: (1, OUT_PAD), o_ref: (B, OUT_PAD)
    y = jnp.dot(x_ref[...], w_ref[...], preferred_element_type=jnp.float32)
    y = y + b_ref[...]
    o_ref[...] = jnp.where(y > 0, y, y * NEGATIVE_SLOPE).astype(o_ref.dtype)


def linear_leakyrelu(x, w_t, b):
    """x: (B, IN) f32, w_t: (IN, OUT) f32, b: (OUT,) f32 -> (B, OUT) f32."""
    B, IN = x.shape
    OUT = w_t.shape[1]

    # Pad the output feature dim to a full lane width (128). Zero-padding the
    # weight and bias makes the extra lanes compute to exactly 0; we slice
    # them off after the call.
    out_pad = ((OUT + LANE - 1) // LANE) * LANE
    pad = out_pad - OUT
    w_p = jnp.pad(w_t, ((0, 0), (0, pad)))
    b_p = jnp.pad(b, ((0, pad),)).reshape(1, out_pad)

    vmem_spec = pl.BlockSpec(memory_space=pltpu.MemorySpace.VMEM)

    out = pl.pallas_call(
        linear_leakyrelu_kernel,
        out_shape=jax.ShapeDtypeStruct((B, out_pad), jnp.float32),
        in_specs=[vmem_spec, vmem_spec, vmem_spec],
        out_specs=vmem_spec,
    )(x, w_p, b_p)

    return out[:, :OUT]


if __name__ == "__main__":
    key = jax.random.PRNGKey(0)
    k_x, k_w, k_b = jax.random.split(key, 3)

    B, IN, OUT = 1, 64, 100

    # Deterministic "parameters" (synthetic, matching nn.Linear(64, 100) shapes).
    # PyTorch Linear weight is (OUT, IN); we keep it transposed as (IN, OUT).
    bound = 1.0 / (IN ** 0.5)
    w_t = jax.random.uniform(k_w, (IN, OUT), jnp.float32, -bound, bound)
    b = jax.random.uniform(k_b, (OUT,), jnp.float32, -bound, bound)

    x1 = jax.random.normal(k_x, (B, IN), jnp.float32)

    out = linear_leakyrelu(x1, w_t, b)
    out = jax.block_until_ready(out)

    # Reference check in plain JAX.
    y_ref = x1 @ w_t + b
    ref = jnp.where(y_ref > 0, y_ref, y_ref * NEGATIVE_SLOPE)
    assert out.shape == (B, OUT)
    assert jnp.allclose(out, ref, atol=1e-5), "mismatch vs reference"

    print("KERNEL_OK")
</pallas_src>

<mosaic_0001>
module attributes {stable_mosaic.version = 11 : i64} {
  func.func @linear_leakyrelu_kernel(%arg0: memref<1x64xf32, #tpu.memory_space<vmem>>, %arg1: memref<64x128xf32, #tpu.memory_space<vmem>>, %arg2: memref<1x128xf32, #tpu.memory_space<vmem>>, %arg3: memref<1x128xf32, #tpu.memory_space<vmem>>) attributes {dimension_semantics = [], scalar_prefetch = 0 : i64, scratch_operands = 0 : i64, tpu.core_type = #tpu.core_type<tc>} {
    %c0 = arith.constant 0 : index
    %c0_0 = arith.constant 0 : index
    %0 = vector.load %arg0[%c0, %c0_0] : memref<1x64xf32, #tpu.memory_space<vmem>>, vector<1x64xf32>
    %c0_1 = arith.constant 0 : index
    %c0_2 = arith.constant 0 : index
    %1 = vector.load %arg1[%c0_1, %c0_2] : memref<64x128xf32, #tpu.memory_space<vmem>>, vector<64x128xf32>
    %cst = arith.constant dense<0.000000e+00> : vector<1x128xf32>
    %2 = tpu.matmul %0, %1, %cst {dimension_numbers = #tpu.dot_dimension_numbers<[1], [0], [0], [1], [0, 0, 1, 1], [], []>} : vector<1x64xf32>, vector<64x128xf32>, vector<1x128xf32> -> vector<1x128xf32>
    %c0_3 = arith.constant 0 : index
    %c0_4 = arith.constant 0 : index
    %3 = vector.load %arg2[%c0_3, %c0_4] : memref<1x128xf32, #tpu.memory_space<vmem>>, vector<1x128xf32>
    %4 = arith.addf %2, %3 : vector<1x128xf32>
    %cst_5 = arith.constant 0.000000e+00 : f32
    %5 = vector.broadcast %cst_5 : f32 to vector<1x128xf32>
    %6 = arith.cmpf ogt, %4, %5 : vector<1x128xf32>
    %cst_6 = arith.constant 0.00999999977 : f32
    %7 = vector.broadcast %cst_6 : f32 to vector<1x128xf32>
    %8 = arith.mulf %4, %7 : vector<1x128xf32>
    %9 = arith.select %6, %4, %8 : vector<1x128xi1>, vector<1x128xf32>
    %c0_7 = arith.constant 0 : index
    %c0_8 = arith.constant 0 : index
    %10 = vector.load %arg3[%c0_7, %c0_8] : memref<1x128xf32, #tpu.memory_space<vmem>>, vector<1x128xf32>
    tpu.vector_store %arg3[%c0_7, %c0_8], %9 {strides = array<i32>} : memref<1x128xf32, #tpu.memory_space<vmem>>, vector<1x128xf32>,
    return
  }
}

</mosaic_0001>

<llo_original>
// kernel: tpu_custom_call.1
$region0: #{tpu_custom_call.1}
  #allocation0 [shape = 'u32[]', space=smem, size = 0x4, offset = 0x4, fixed_abs, tag = 'smem constant byte address 0x4 - core index']
  #allocation1 [shape = 'u32[144,128]{1,0:T(1,128)}', space=vmem, size = 0x12000, scoped, tag = 'internal scratch']
  %s0 = inlined_call_operand.hbm [shape: f32[1,64], index: 0, kind: input, shape index: {}]
  %s1 = inlined_call_operand.hbm [shape: f32[64,128], index: 1, kind: input, shape index: {}]
  %s2 = inlined_call_operand.vmem [shape: f32[1,128], index: 2, kind: input, shape index: {}]
  %s3 = inlined_call_operand.hbm [shape: f32[1,128], index: 3, kind: output, shape index: {}]
  %s4 = sld [smem:[#allocation0]]
  $region30: #{tpu_custom_call.1} parent=0
    _
  %s6 = ssub.s32 1, %s4
  %s7 = scalar_select 0, %s6, %s4
  $region1: #{tpu_custom_call.1} parent=0
    #allocation2 [shape = 'u8[512]{0}', space=vmem, size = 0x400, scoped, tag = 'input window, operand 0, single buffered']
    #allocation3 [shape = 's32[1]{0}', space=sflag, size = 0x4, scoped, tag = 'scoped memory for tpu_custom_call.1']
    #allocation4 [shape = 's32[1]{0}', space=sflag, size = 0x4, scoped, tag = 'scoped memory for tpu_custom_call.1']
    #allocation5 [shape = 'u8[32768]{0}', space=vmem, size = 0x8000, scoped, tag = 'input window, operand 1, single buffered']
    #allocation6 [shape = 's32[1]{0}', space=sflag, size = 0x4, scoped, tag = 'scoped memory for tpu_custom_call.1']
    #allocation7 [shape = 'u8[512]{0}', space=vmem, size = 0x400, scoped, tag = 'output window, operand 0, single buffered']
    %8 = vsyncpa [#allocation3], 0
    %9 = vsyncpa [#allocation6], 0
    %10 = vsyncpa [#allocation4], 0
    // Predicated region
    $region2: #{tpu_custom_call.1} parent=1 // pred_check
      _
    $region3: #{tpu_custom_call.1} parent=1 // pred_check_branch
      %12 = sbr.rel (0) target = $region5
    $region4: #{tpu_custom_call.1} parent=1 // pred_region
      %s14 = ssub.s32 16, 16
      %15 = vsyncadd [#allocation3], %s14
      %s17 = sshll.u32 [#allocation2], 4
      %s18 = int_to_ptr.vmem [resolvable:$true] %s17
      %20 = dma.hbm_to_vmem [thread:$0]  %s0, 16, %s18, [#allocation3]
    $region5: #{tpu_custom_call.1} parent=1 // pred_fallthru
      _
    // Predicated region
    $region6: #{tpu_custom_call.1} parent=1 // pred_check
      _
    $region7: #{tpu_custom_call.1} parent=1 // pred_check_branch
      %22 = sbr.rel (0) target = $region9
    $region8: #{tpu_custom_call.1} parent=1 // pred_region
      %s24 = ssub.s32 1024, 1024
      %25 = vsyncadd [#allocation6], %s24
      %s26 = sshll.u32 [#allocation5], 4
      %s27 = int_to_ptr.vmem [resolvable:$true] %s26
      %32 = dma.hbm_to_vmem [thread:$0]  %s1, 1024, %s27, [#allocation6], 128, 128, 8
    $region9: #{tpu_custom_call.1} parent=1 // pred_fallthru
      _
    // Predicated region
    $region10: #{tpu_custom_call.1} parent=1 // pred_check
      _
    $region11: #{tpu_custom_call.1} parent=1 // pred_check_branch
      %34 = sbr.rel (0) target = $region13
    $region12: #{tpu_custom_call.1} parent=1 // pred_region
      _
    $region13: #{tpu_custom_call.1} parent=1 // pred_fallthru
      _
    // Predicated region
    $region14: #{tpu_custom_call.1} parent=1 // pred_check
      _
    $region15: #{tpu_custom_call.1} parent=1 // pred_check_branch
      %36 = sbr.rel (0) target = $region17
    $region16: #{tpu_custom_call.1} parent=1 // pred_region
      %37 = dma.done [#allocation3], 16
    $region17: #{tpu_custom_call.1} parent=1 // pred_fallthru
      _
    // Predicated region
    $region18: #{tpu_custom_call.1} parent=1 // pred_check
      _
    $region19: #{tpu_custom_call.1} parent=1 // pred_check_branch
      %39 = sbr.rel (0) target = $region21
    $region20: #{tpu_custom_call.1} parent=1 // pred_region
      %40 = dma.done [#allocation6], 1024
    $region21: #{tpu_custom_call.1} parent=1 // pred_fallthru
      _
    %v41 = vld [vmem:[#allocation2] sm:$0x1]
    %v42 = vld [vmem:[#allocation5] sm:$0xff]
    %v43 = vld [vmem:[#allocation5 + $0x8] sm:$0xff]
    %v44 = vld [vmem:[#allocation5 + $0x10] sm:$0xff]
    %v45 = vld [vmem:[#allocation5 + $0x18] sm:$0xff]
    %v46 = vld [vmem:[#allocation5 + $0x20] sm:$0xff]
    %v47 = vld [vmem:[#allocation5 + $0x28] sm:$0xff]
    %v48 = vld [vmem:[#allocation5 + $0x30] sm:$0xff]
    %v49 = vld [vmem:[#allocation5 + $0x38] sm:$0xff]
    %v50 = vld [vmem:[%s2] sm:$0x1]
    %vm51 = vcmask 523264
    %v53 = vsel %vm51, %v41, 0
    %55 = vmatprep.subr.mxu0 0.0
    %56 = vmatpush1.msra.mxu0 %v42
    %57 = vmatprep.subr.mxu0 0.0
    %58 = vmatpush1.msra.mxu0 %v43
    %59 = vmatprep.subr.mxu0 0.0
    %60 = vmatpush1.msra.mxu0 %v44
    %61 = vmatprep.subr.mxu0 0.0
    %62 = vmatpush1.msra.mxu0 %v45
    %63 = vmatprep.subr.mxu0 0.0
    %64 = vmatpush1.msra.mxu0 %v46
    %65 = vmatprep.subr.mxu0 0.0
    %66 = vmatpush1.msra.mxu0 %v47
    %67 = vmatprep.subr.mxu0 0.0
    %68 = vmatpush1.msra.mxu0 %v48
    %69 = vmatprep.subr.mxu0 0.0
    %70 = vmatpush1.msra.mxu0 %v49
    %71 = vmatprep.subr.mxu0 0.0
    %72 = vmatpush1.msra.mxu0 0.0
    %73 = vmatprep.subr.mxu0 0.0
    %74 = vmatpush1.msra.mxu0 0.0
    %75 = vmatprep.subr.mxu0 0.0
    %76 = vmatpush1.msra.mxu0 0.0
    %77 = vmatprep.subr.mxu0 0.0
    %78 = vmatpush1.msra.mxu0 0.0
    %79 = vmatprep.subr.mxu0 0.0
    %80 = vmatpush1.msra.mxu0 0.0
    %81 = vmatprep.subr.mxu0 0.0
    %82 = vmatpush1.msra.mxu0 0.0
    %83 = vmatprep.subr.mxu0 0.0
    %84 = vmatpush1.msra.mxu0 0.0
    %85 = vmatprep.subr.mxu0 0.0
    %86 = vmatpush1.msra.mxu0 0.0
    %87 = vmatprep.subr.mxu0 0.0
    %88 = vmatpush1.msra.mxu0 0.0
    %89 = vmatprep.subr.mxu0 0.0
    %90 = vmatpush1.msra.mxu0 0.0
    %91 = vmatprep.subr.mxu0 0.0
    %92 = vmatpush1.msra.mxu0 0.0
    %93 = vmatprep.subr.mxu0 0.0
    %94 = vmatpush1.msra.mxu0 0.0
    %95 = vmatprep.subr.mxu0 0.0
    %96 = vmatpush1.msra.mxu0 0.0
    %97 = vmatprep.subr.mxu0 0.0
    %98 = vmatpush1.msra.mxu0 0.0
    %99 = vmatprep.subr.mxu0 0.0
    %100 = vmatpush1.msra.mxu0 0.0
    %101 = vmatprep.subr.mxu0 0.0
    %102 = vmatpush1.msra.mxu0 0.0
    %103 = vmatprep.subr.mxu0 0.0
    %104 = vmatpush1.msra.mxu0 0.0
    %105 = vmatprep.subr.mxu0 0.0
    %106 = vmatpush1.msra.mxu0 0.0
    %107 = vmatprep.subr.mxu0 0.0
    %108 = vmatpush1.msra.mxu0 0.0
    %109 = vmatprep.subr.mxu0 0.0
    %110 = vmatpush1.msra.mxu0 0.0
    %111 = vmatprep.subr.mxu0 0.0
    %112 = vmatpush1.msra.mxu0 0.0
    %113 = vmatprep.subr.mxu0 0.0
    %114 = vmatpush1.msra.mxu0 0.0
    %115 = vmatprep.subr.mxu0 0.0
    %116 = vmatpush1.msra.mxu0 0.0
    %117 = vmatprep.subr.mxu0 0.0
    %118 = vmatpush1.msra.mxu0 0.0
    %119 = vmatprep.mubr.f32.mxu0 0.0
    %120 = vmatmul.mubr.f32.gmra.mrb[0].mxu0 %v53
    %v121 = vpop.f32.mrb[0].mxu0
    %v122 = vadd.f32 %v50, %v121
    %v123 = vpop.f32.mrb[0].mxu0
    %124 = vdwg.mxu0
    %vm125 = vcmp.gt.f32.partialorder %v122, 0.0
    %v126 = vmul.f32 %v122, 0.01
    %v127 = vsel %vm125, %v122, %v126
    %128 = vst [vmem:[#allocation7] sm:$0x1] %v127
    // Predicated region
    $region22: #{tpu_custom_call.1} parent=1 // pred_check
      _
    $region23: #{tpu_custom_call.1} parent=1 // pred_check_branch
      %130 = sbr.rel (0) target = $region25
    $region24: #{tpu_custom_call.1} parent=1 // pred_region
      %s132 = ssub.s32 16, 16
      %133 = vsyncadd [#allocation4], %s132
      %s135 = sshll.u32 [#allocation7], 4
      %s136 = int_to_ptr.vmem [resolvable:$true] %s135
      %138 = dma.vmem_to_hbm [thread:$0]  %s136, 16, %s3, [#allocation4]
    $region25: #{tpu_custom_call.1} parent=1 // pred_fallthru
      _
    // Predicated region
    $region26: #{tpu_custom_call.1} parent=1 // pred_check
      _
    $region27: #{tpu_custom_call.1} parent=1 // pred_check_branch
      %140 = sbr.rel (0) target = $region29
    $region28: #{tpu_custom_call.1} parent=1 // pred_region
      %141 = dma.done [#allocation4], 16
    $region29: #{tpu_custom_call.1} parent=1 // pred_fallthru
      _
    %142 = vsyncpa [#allocation3], 1
    %143 = vsyncpa [#allocation6], 1
    %144 = vsyncpa [#allocation4], 1

</llo_original>
